<compile_context>
chip_gen: v7x
topology: tpu7x:2x2x1
jax: 0.10.0
libtpu: 0.0.40
codegen_flags: <defaults>
</compile_context>

<pallas_src>
import functools

import jax
import jax.numpy as jnp
from jax.experimental import pallas as pl
from jax.experimental.pallas import tpu as pltpu

_MiB = 1024 * 1024


def _round_up(x, m):
    return ((x + m - 1) // m) * m


def _vmem_budget():
    """Generation-aware (budget, scoped-limit): v5e/v6e 128 MiB VMEM, v7x 64 MiB."""
    cap = 64 * _MiB  # conservative default = smallest (v7x)
    try:
        info = pltpu.get_tpu_info()
        cap = int(getattr(info, "vmem_capacity_bytes", cap)) or cap
    except Exception:
        pass
    budget = max(12 * _MiB, min(int(cap * 0.6), 64 * _MiB))
    limit = int(min(cap * 3 // 4, budget + 16 * _MiB))
    return budget, limit


# ----------------------------------------------------------------------------
# Forward kernels: population of linear layers, tiled (members, B, OUT, IN).
#   x_ref: (TKM, TM, TKIN)   w_ref: (TKM, TKIN, TN)
#   b_ref: (TKM, 1, TN)      o_ref: (TKM, TM, TN)   [acc_ref: (TKM, TM, TN) f32]
# ----------------------------------------------------------------------------
def _pop_linear_fwd_single_kernel(x_ref, w_ref, b_ref, o_ref):
    # Whole contraction in one grid step: y = x @ w + b.  No accumulator.
    acc = jnp.einsum('kbi,kio->kbo', x_ref[...], w_ref[...],
                     preferred_element_type=jnp.float32)
    o_ref[...] = (acc + b_ref[...].astype(jnp.float32)).astype(o_ref.dtype)


def _pop_linear_fwd_direct_kernel(x_ref, w_ref, b_ref, o_ref):
    # f32 output, split contraction: accumulate directly into the VMEM-resident
    # output tile (no scratch, no zero-fill, no epilogue copy).
    kin = pl.program_id(3)
    contrib = jnp.einsum('kbi,kio->kbo', x_ref[...], w_ref[...],
                         preferred_element_type=jnp.float32)

    @pl.when(kin == 0)
    def _():
        o_ref[...] = b_ref[...].astype(jnp.float32) + contrib   # bias broadcast

    @pl.when(kin != 0)
    def _():
        o_ref[...] += contrib


def _pop_linear_fwd_acc_kernel(x_ref, w_ref, b_ref, o_ref, acc_ref):
    # Non-f32 output with a split contraction: keep an f32 scratch accumulator.
    kin = pl.program_id(3)
    contrib = jnp.einsum('kbi,kio->kbo', x_ref[...], w_ref[...],
                         preferred_element_type=jnp.float32)

    @pl.when(kin == 0)
    def _():
        acc_ref[...] = b_ref[...].astype(jnp.float32) + contrib

    @pl.when(kin != 0)
    def _():
        acc_ref[...] += contrib

    @pl.when(kin == pl.num_programs(3) - 1)
    def _():
        o_ref[...] = acc_ref[...].astype(o_ref.dtype)


def _choose_forward_tiles(K, B, IN, OUT_pad, xi, wi, oi, bi, out_is_f32, budget):
    # Rows (batch) tile: full extent unless B is large; then pad to a
    # 256-multiple (never fall back to 8-row matmuls).
    if B <= 512:
        B_pad, TM = B, B
    else:
        B_pad = _round_up(B, 256)
        TM = 512 if B_pad % 512 == 0 else 256

    # Contraction (IN) candidates: prefer one deep block (v6e/v7x MXUs are
    # 256-wide; fewer kin steps -> fewer read-modify-writes and grid steps).
    kin_opts = []
    if IN <= 2048:
        kin_opts.append((IN, IN))                     # full extent, no IN padding
    else:
        for t in (2048, 1024, 512, 256):
            ipad = _round_up(IN, t)
            if ipad - IN <= max(128, IN // 8):        # avoid gross over-padding
                kin_opts.append((ipad, t))
                break
    if IN > 128:
        kin_opts.append((_round_up(IN, 128), 128))    # small-tile fallback

    # OUT (lane) candidates: widest first (lane-dense stores, short grid).
    tn_opts = []
    if OUT_pad <= 1024:
        tn_opts.append(OUT_pad)
    for t in (512, 256, 128):
        if t < OUT_pad and OUT_pad % t == 0:
            tn_opts.append(t)

    tm_r = _round_up(TM, 8)

    def vmem_need(tkm, tkin, tn, n_kin):
        tkin_r = _round_up(tkin, 128)
        need = 2 * (tkm * tm_r * tkin_r * xi      # x tile, double-buffered
                    + tkm * tkin_r * tn * wi      # w tile, double-buffered
                    + tkm * tm_r * tn * oi        # y tile, double-buffered
                    + tkm * 8 * tn * bi)          # bias tile (sublane 1 pads to 8)
        if n_kin > 1 and not out_is_f32:
            need += tkm * tm_r * tn * 4           # f32 scratch accumulator
        return need

    choice = None
    for in_pad, tkin in kin_opts:
        n_kin = in_pad // tkin
        for tn in tn_opts:
            for tkm in range(K, 0, -1):
                if K % tkm:
                    continue
                if vmem_need(tkm, tkin, tn, n_kin) <= budget:
                    choice = (tkm, tn, in_pad, tkin)
                    break
            if choice is not None:
                break
        if choice is not None:
            break
    if choice is None:                            # last resort: smallest tiles
        in_pad, tkin = kin_opts[-1]
        choice = (1, tn_opts[-1], in_pad, tkin)
    TKM, TN, IN_pad, TKIN = choice

    # v7x has 2 TensorCores: keep >=2 parallel grid iterations for non-tiny
    # problems (tiny problems intentionally stay single-step).
    w_bytes = K * _round_up(IN, 128) * OUT_pad * wi
    par = (K // TKM) * (B_pad // TM) * (OUT_pad // TN)
    if w_bytes >= 4 * _MiB and par == 1:
        if TKM == K and K % 2 == 0 and K >= 2:
            TKM = K // 2
        elif TN == OUT_pad and OUT_pad % 256 == 0:
            TN = OUT_pad // 2

    return TKM, TM, TN, TKIN, B_pad, IN_pad


@functools.partial(jax.jit, static_argnames=("compute_dtype",))
def pop_linear_forward(x, w, b, compute_dtype=None):
    """x: (K, B, IN), w: (K, IN, OUT), b: (K, OUT) -> (K, B, OUT).

    compute_dtype: optionally cast x/w (e.g. jnp.bfloat16 on v6e/v7x — halves
    weight-stream HBM traffic) while keeping f32 MXU accumulation.
    """
    K, B, IN = x.shape
    OUT = w.shape[-1]
    out_dtype = x.dtype

    if compute_dtype is not None:
        x = x.astype(compute_dtype)
        w = w.astype(compute_dtype)

    OUT_pad = _round_up(OUT, 128)                 # lane-dense (unmasked) stores
    budget, vmem_limit = _vmem_budget()

    xi = jnp.dtype(x.dtype).itemsize
    wi = jnp.dtype(w.dtype).itemsize
    oi = jnp.dtype(out_dtype).itemsize
    bi = jnp.dtype(b.dtype).itemsize
    out_is_f32 = jnp.dtype(out_dtype) == jnp.dtype(jnp.float32)

    TKM, TM, TN, TKIN, B_pad, IN_pad = _choose_forward_tiles(
        K, B, IN, OUT_pad, xi, wi, oi, bi, out_is_f32, budget)
    n_kin = IN_pad // TKIN

    # Zero padding (numerically exact for the matmul).  Callers that keep the
    # weights pre-padded on OUT (PopLinear does) never pay the w/b pad here,
    # and IN padding only happens when the contraction is actually split.
    pad_rows = B_pad - B
    pad_in = IN_pad - IN
    if pad_rows or pad_in:
        x = jnp.pad(x, ((0, 0), (0, pad_rows), (0, pad_in)))
    if pad_in:
        w = jnp.pad(w, ((0, 0), (0, pad_in), (0, 0)))
    if OUT_pad != OUT:
        w = jnp.pad(w, ((0, 0), (0, 0), (0, OUT_pad - OUT)))
        b = jnp.pad(b, ((0, 0), (0, OUT_pad - OUT)))
    b3 = b.reshape(K, 1, OUT_pad)

    if n_kin == 1:
        kernel, scratch = _pop_linear_fwd_single_kernel, []
    elif out_is_f32:
        kernel, scratch = _pop_linear_fwd_direct_kernel, []
    else:
        kernel = _pop_linear_fwd_acc_kernel
        scratch = [pltpu.VMEM((TKM, TM, TN), jnp.float32)]

    grid = (K // TKM, B_pad // TM, OUT_pad // TN, n_kin)

    y = pl.pallas_call(
        kernel,
        out_shape=jax.ShapeDtypeStruct((K, B_pad, OUT_pad), out_dtype),
        grid_spec=pltpu.PrefetchScalarGridSpec(
            num_scalar_prefetch=0,
            grid=grid,
            in_specs=[
                pl.BlockSpec((TKM, TM, TKIN), lambda km, bm, n, kin: (km, bm, kin)),
                pl.BlockSpec((TKM, TKIN, TN), lambda km, bm, n, kin: (km, kin, n)),
                pl.BlockSpec((TKM, 1, TN), lambda km, bm, n, kin: (km, 0, n)),
            ],
            out_specs=pl.BlockSpec((TKM, TM, TN), lambda km, bm, n, kin: (km, bm, n)),
            scratch_shapes=scratch,
        ),
        compiler_params=pltpu.CompilerParams(
            dimension_semantics=("parallel", "parallel", "parallel", "arbitrary"),
            vmem_limit_bytes=vmem_limit,
        ),
    )(x, w, b3)

    if B_pad != B or OUT_pad != OUT:
        y = y[:, :B, :OUT]
    return y


# ----------------------------------------------------------------------------
# mean() kernel: streaming reduction over the member axis, tiled over P.
# ----------------------------------------------------------------------------
def _pop_mean_kernel(v_ref, o_ref):
    # v_ref: (K, TP), o_ref: (1, TP) — sublane reduce over members (XLU path)
    o_ref[...] = jnp.mean(v_ref[...].astype(jnp.float32), axis=0,
                          keepdims=True).astype(o_ref.dtype)


@jax.jit
def pop_mean(arr):
    """arr: (K, P) -> (1, P) mean over the member axis (P-tiled streaming)."""
    K, P = arr.shape
    P_pad = _round_up(P, 128)
    if P_pad != P:
        arr = jnp.pad(arr, ((0, 0), (0, P_pad - P)))

    itemsize = jnp.dtype(arr.dtype).itemsize
    budget, vmem_limit = _vmem_budget()
    budget = min(budget, 32 * _MiB)
    K_r = _round_up(K, 8)
    per_lane = 2 * K_r * itemsize + 2 * 4         # dbl-buffered input + output col
    if per_lane * P_pad <= budget:
        TP = P_pad                                # single step
    else:
        tp_cap = max(128, (budget // per_lane) // 128 * 128)
        TP = 128
        t = (min(P_pad, tp_cap) // 128) * 128
        while t >= 128:
            if P_pad % t == 0:
                TP = t
                break
            t -= 128
    # TODO(synk): for populations so large that even a (K, 128) block exceeds
    # VMEM, add a K-tiled accumulating variant.

    out = pl.pallas_call(
        _pop_mean_kernel,
        out_shape=jax.ShapeDtypeStruct((1, P_pad), arr.dtype),
        grid_spec=pltpu.PrefetchScalarGridSpec(
            num_scalar_prefetch=0,
            grid=(P_pad // TP,),
            in_specs=[pl.BlockSpec((K, TP), lambda p: (0, p))],
            out_specs=pl.BlockSpec((1, TP), lambda p: (0, p)),
        ),
        compiler_params=pltpu.CompilerParams(
            dimension_semantics=("parallel",),
            vmem_limit_bytes=vmem_limit,
        ),
    )(arr)
    if P_pad != P:
        out = out[:, :P]
    return out


# ----------------------------------------------------------------------------
# Concrete PopModule in JAX
# ----------------------------------------------------------------------------
class PopLinear:
    """Concrete PopModule: a population of K independent linear layers."""

    def __init__(self, in_features, out_features, n_members=None, w=None, b=None,
                 compute_dtype=None):
        self.in_features = in_features
        self.out_features = out_features
        self._n_members = n_members
        # TODO(synk): set compute_dtype=jnp.bfloat16 on v6e/v7x for ~2x
        # weight-bandwidth once bf16 output tolerances are acceptable.
        self.compute_dtype = compute_dtype
        k = 1 if n_members is None else n_members
        if w is None:
            key = jax.random.PRNGKey(0)
            kw, kb = jax.random.split(key)
            w = jax.random.normal(kw, (k, in_features, out_features),
                                  jnp.float32) * 0.05
            b = jax.random.normal(kb, (k, out_features), jnp.float32) * 0.05
        self._set_params(w, b)

    # Keep OUT pre-padded copies so the per-forward jnp.pad of the weights
    # (a full HBM read+write) never happens on the hot path.
    def _set_params(self, w, b):
        self.w = w          # (K, IN, OUT)  logical
        self.b = b          # (K, OUT)      logical
        out_pad = _round_up(self.out_features, 128)
        if out_pad != self.out_features:
            self._w_fwd = jnp.pad(w, ((0, 0), (0, 0), (0, out_pad - self.out_features)))
            self._b_fwd = jnp.pad(b, ((0, 0), (0, out_pad - self.out_features)))
        else:
            self._w_fwd, self._b_fwd = w, b

    @property
    def n_members(self):
        return self._n_members

    def spawn(self, n_members):
        k = 1 if n_members is None else n_members
        w = jnp.zeros((k, self.in_features, self.out_features), jnp.float32)
        b = jnp.zeros((k, self.out_features), jnp.float32)
        return PopLinear(self.in_features, self.out_features, n_members, w, b,
                         compute_dtype=self.compute_dtype)

    # --- PopModule API (host-side plumbing is plain Python/JAX glue) --------
    def mean(self):
        if self._n_members is None:
            return self
        module = self.spawn(None)
        K = self.w.shape[0]
        # Reduce w and b directly — no pvec concatenate (saves an HBM copy).
        w_mean = pop_mean(self.w.reshape(K, -1)).reshape(
            1, self.in_features, self.out_features)
        b_mean = pop_mean(self.b.reshape(K, -1)).reshape(1, self.out_features)
        module._set_params(w_mean, b_mean)
        return module

    def to_pop(self):
        if self._n_members is not None:
            raise RuntimeError('Module already is a population module')
        module = self.spawn(1)
        module._set_params(self.w, self.b)
        return module

    def member(self, i):
        if self._n_members is None:
            raise RuntimeError('Module has no members')
        module = self.spawn(None)
        module._set_params(self.w[i:i + 1], self.b[i:i + 1])
        return module

    def forward(self, x):
        """x: (K, B, IN) if population, else (B, IN)."""
        if self._n_members is None:
            y = pop_linear_forward(x[None], self._w_fwd, self._b_fwd,
                                   compute_dtype=self.compute_dtype)[0]
        else:
            y = pop_linear_forward(x, self._w_fwd, self._b_fwd,
                                   compute_dtype=self.compute_dtype)
        if self._w_fwd.shape[-1] != self.out_features:
            y = y[..., :self.out_features]
        return y


if __name__ == "__main__":
    # ---- test 1: toy shapes (single-step fast path, OUT padded to 128) -----
    K, B, IN, OUT = 4, 8, 32, 32
    mod = PopLinear(IN, OUT, n_members=K)
    x = jax.random.normal(jax.random.PRNGKey(0), (K, B, IN), jnp.float32)

    y = jax.block_until_ready(mod.forward(x))
    assert y.shape == (K, B, OUT)
    y_ref = jnp.einsum('kbi,kio->kbo', x, mod.w,
                       precision=jax.lax.Precision.HIGHEST) + mod.b[:, None, :]
    assert jnp.allclose(y, y_ref, atol=5e-3), float(jnp.max(jnp.abs(y - y_ref)))

    # mean() — Pallas streaming reduction over members
    mean_mod = mod.mean()
    jax.block_until_ready(mean_mod.w)
    assert jnp.allclose(mean_mod.w[0], mod.w.mean(axis=0), atol=1e-6)
    assert jnp.allclose(mean_mod.b[0], mod.b.mean(axis=0), atol=1e-6)

    # member() + non-population forward
    m1 = mod.member(1)
    y1 = jax.block_until_ready(m1.forward(x[1]))
    assert jnp.allclose(y1, y_ref[1], atol=5e-3)

    # ---- test 2: OUT padding + full-extent (deep) contraction, 1 kin step --
    K2, B2, IN2, OUT2 = 2, 8, 592, 600
    mod2 = PopLinear(IN2, OUT2, n_members=K2)
    x2 = jax.random.normal(jax.random.PRNGKey(1), (K2, B2, IN2), jnp.float32)
    y2 = jax.block_until_ready(mod2.forward(x2))
    assert y2.shape == (K2, B2, OUT2)
    y2_ref = jnp.einsum('kbi,kio->kbo', x2, mod2.w,
                        precision=jax.lax.Precision.HIGHEST) + mod2.b[:, None, :]
    assert jnp.allclose(y2, y2_ref, atol=2e-2), float(jnp.max(jnp.abs(y2 - y2_ref)))

    # ---- test 3: split contraction (multi kin step), direct f32 accumulate -
    K3, B3, IN3, OUT3 = 2, 8, 3072, 256
    mod3 = PopLinear(IN3, OUT3, n_members=K3)
    x3 = jax.random.normal(jax.random.PRNGKey(2), (K3, B3, IN3), jnp.float32)
    y3 = jax.block_until_ready(mod3.forward(x3))
    assert y3.shape == (K3, B3, OUT3)
    y3_ref = jnp.einsum('kbi,kio->kbo', x3, mod3.w,
                        precision=jax.lax.Precision.HIGHEST) + mod3.b[:, None, :]
    assert jnp.allclose(y3, y3_ref, atol=5e-2), float(jnp.max(jnp.abs(y3 - y3_ref)))

    # ---- test 4: bf16 inputs/outputs, split contraction (scratch acc path) -
    x3b = x3.astype(jnp.bfloat16)
    w3b = mod3.w.astype(jnp.bfloat16)
    y3b = jax.block_until_ready(pop_linear_forward(x3b, w3b, mod3.b))
    assert y3b.dtype == jnp.bfloat16 and y3b.shape == (K3, B3, OUT3)
    y3b_ref = jnp.einsum('kbi,kio->kbo', x3b.astype(jnp.float32),
                         w3b.astype(jnp.float32),
                         precision=jax.lax.Precision.HIGHEST) + mod3.b[:, None, :]
    err = float(jnp.max(jnp.abs(y3b.astype(jnp.float32) - y3b_ref)))
    assert err < 0.1, err

    print("KERNEL_OK")
</pallas_src>

<mosaic_0001>
module attributes {stable_mosaic.version = 11 : i64} {
  func.func @_pop_linear_fwd_single_kernel(%arg0: i32, %arg1: i32, %arg2: i32, %arg3: i32, %arg4: memref<4x8x32xf32, #tpu.memory_space<vmem>>, %arg5: memref<4x32x128xf32, #tpu.memory_space<vmem>>, %arg6: memref<4x1x128xf32, #tpu.memory_space<vmem>>, %arg7: memref<4x8x128xf32, #tpu.memory_space<vmem>>) attributes {dimension_semantics = [#tpu.dimension_semantics<parallel>, #tpu.dimension_semantics<parallel>, #tpu.dimension_semantics<parallel>, #tpu.dimension_semantics<arbitrary>], iteration_bounds = array<i64: 1, 1, 1, 1>, scalar_prefetch = 0 : i64, scratch_operands = 0 : i64, tpu.core_type = #tpu.core_type<tc>, window_params = [{transform_indices = @transform_0, window_bounds = array<i64: 4, 8, 32>}, {transform_indices = @transform_1, window_bounds = array<i64: 4, 32, 128>}, {transform_indices = @transform_2, window_bounds = array<i64: 4, 1, 128>}, {transform_indices = @transform_3, window_bounds = array<i64: 4, 8, 128>}]} {
    %c0 = arith.constant 0 : index
    %c0_0 = arith.constant 0 : index
    %c0_1 = arith.constant 0 : index
    %0 = vector.load %arg4[%c0, %c0_0, %c0_1] : memref<4x8x32xf32, #tpu.memory_space<vmem>>, vector<4x8x32xf32>
    %c0_2 = arith.constant 0 : index
    %c0_3 = arith.constant 0 : index
    %c0_4 = arith.constant 0 : index
    %1 = vector.load %arg5[%c0_2, %c0_3, %c0_4] : memref<4x32x128xf32, #tpu.memory_space<vmem>>, vector<4x32x128xf32>
    "tpu.trace_start"() <{level = 10 : i32, message = "kbi,kio->kbo"}> : () -> ()
    %cst = arith.constant dense<0.000000e+00> : vector<4x8x128xf32>
    %2 = tpu.matmul %0, %1, %cst {dimension_numbers = #tpu.dot_dimension_numbers<[2], [1], [1], [2], [0, 0, 0, 1, 1, 2], [0], [0]>} : vector<4x8x32xf32>, vector<4x32x128xf32>, vector<4x8x128xf32> -> vector<4x8x128xf32>
    "tpu.trace_stop"() : () -> ()
    %c0_5 = arith.constant 0 : index
    %c0_6 = arith.constant 0 : index
    %c0_7 = arith.constant 0 : index
    %3 = vector.load %arg6[%c0_5, %c0_6, %c0_7] : memref<4x1x128xf32, #tpu.memory_space<vmem>>, vector<4x1x128xf32>
    %4 = vector.broadcast %3 : vector<4x1x128xf32> to vector<4x8x128xf32>
    %5 = arith.addf %2, %4 : vector<4x8x128xf32>
    %c0_8 = arith.constant 0 : index
    %c0_9 = arith.constant 0 : index
    %c0_10 = arith.constant 0 : index
    %6 = vector.load %arg7[%c0_8, %c0_9, %c0_10] : memref<4x8x128xf32, #tpu.memory_space<vmem>>, vector<4x8x128xf32>
    tpu.vector_store %arg7[%c0_8, %c0_9, %c0_10], %5 {strides = array<i32>} : memref<4x8x128xf32, #tpu.memory_space<vmem>>, vector<4x8x128xf32>,
    return
  }
  func.func @transform_0(%arg0: i32, %arg1: i32, %arg2: i32, %arg3: i32) -> (i32, i32, i32) {
    %c0_i32 = arith.constant 0 : i32
    return %arg0, %arg1, %arg3 : i32, i32, i32
  }
  func.func @transform_1(%arg0: i32, %arg1: i32, %arg2: i32, %arg3: i32) -> (i32, i32, i32) {
    %c0_i32 = arith.constant 0 : i32
    return %arg0, %arg3, %arg2 : i32, i32, i32
  }
  func.func @transform_2(%arg0: i32, %arg1: i32, %arg2: i32, %arg3: i32) -> (i32, i32, i32) {
    %c0_i32 = arith.constant 0 : i32
    %c0_i32_0 = arith.constant 0 : i32
    return %arg0, %c0_i32, %arg2 : i32, i32, i32
  }
  func.func @transform_3(%arg0: i32, %arg1: i32, %arg2: i32, %arg3: i32) -> (i32, i32, i32) {
    %c0_i32 = arith.constant 0 : i32
    return %arg0, %arg1, %arg2 : i32, i32, i32
  }
}

</mosaic_0001>

<llo_original>
// kernel: pop_linear_forward.1
$region0: #{pop_linear_forward.1}
  #allocation0 [shape = 'u32[]', space=smem, size = 0x4, offset = 0x4, fixed_abs, tag = 'smem constant byte address 0x4 - core index']
  #allocation1 [shape = 'u32[144,128]{1,0:T(1,128)}', space=vmem, size = 0x12000, scoped, tag = 'internal scratch']
  %s0 = inlined_call_operand.hbm [shape: f32[4,8,32], index: 0, kind: input, shape index: {}]
  %s1 = inlined_call_operand.hbm [shape: f32[4,32,128], index: 1, kind: input, shape index: {}]
  %s2 = inlined_call_operand.vmem [shape: f32[4,1,128], index: 2, kind: input, shape index: {}]
  %s3 = inlined_call_operand.hbm [shape: f32[4,8,128], index: 3, kind: output, shape index: {}]
  %s4 = sld [smem:[#allocation0]]
  $region30: #{pop_linear_forward.1} parent=0
    _
  %s6 = ssub.s32 1, %s4
  %s7 = scalar_select 0, %s6, %s4
  $region1: #{pop_linear_forward.1} parent=0
    #allocation2 [shape = 'u8[16384]{0}', space=vmem, size = 0x4000, scoped, tag = 'input window, operand 0, single buffered']
    #allocation3 [shape = 's32[1]{0}', space=sflag, size = 0x4, scoped, tag = 'scoped memory for pop_linear_forward.1']
    #allocation4 [shape = 's32[1]{0}', space=sflag, size = 0x4, scoped, tag = 'scoped memory for pop_linear_forward.1']
    #allocation5 [shape = 'u8[65536]{0}', space=vmem, size = 0x10000, scoped, tag = 'input window, operand 1, single buffered']
    #allocation6 [shape = 's32[1]{0}', space=sflag, size = 0x4, scoped, tag = 'scoped memory for pop_linear_forward.1']
    #allocation7 [shape = 'u8[16384]{0}', space=vmem, size = 0x4000, scoped, tag = 'output window, operand 0, single buffered']
    %8 = vsyncpa [#allocation3], 0
    %9 = vsyncpa [#allocation6], 0
    %10 = vsyncpa [#allocation4], 0
    // Predicated region
    $region2: #{pop_linear_forward.1} parent=1 // pred_check
      _
    $region3: #{pop_linear_forward.1} parent=1 // pred_check_branch
      %12 = sbr.rel (0) target = $region5
    $region4: #{pop_linear_forward.1} parent=1 // pred_region
      %s14 = ssub.s32 512, 512
      %15 = vsyncadd [#allocation3], %s14
      %s16 = sshll.u32 [#allocation2], 4
      %s17 = int_to_ptr.vmem [resolvable:$true] %s16
      %22 = dma.hbm_to_vmem [thread:$0]  %s0, 512, %s17, [#allocation3], 128, 128, 8
    $region5: #{pop_linear_forward.1} parent=1 // pred_fallthru
      _
    // Predicated region
    $region6: #{pop_linear_forward.1} parent=1 // pred_check
      _
    $region7: #{pop_linear_forward.1} parent=1 // pred_check_branch
      %24 = sbr.rel (0) target = $region9
    $region8: #{pop_linear_forward.1} parent=1 // pred_region
      %s26 = ssub.s32 2048, 2048
      %27 = vsyncadd [#allocation6], %s26
      %s28 = sshll.u32 [#allocation5], 4
      %s29 = int_to_ptr.vmem [resolvable:$true] %s28
      %34 = dma.hbm_to_vmem [thread:$0]  %s1, 2048, %s29, [#allocation6], 128, 128, 8
    $region9: #{pop_linear_forward.1} parent=1 // pred_fallthru
      _
    // Predicated region
    $region10: #{pop_linear_forward.1} parent=1 // pred_check
      _
    $region11: #{pop_linear_forward.1} parent=1 // pred_check_branch
      %36 = sbr.rel (0) target = $region13
    $region12: #{pop_linear_forward.1} parent=1 // pred_region
      _
    $region13: #{pop_linear_forward.1} parent=1 // pred_fallthru
      _
    // Predicated region
    $region14: #{pop_linear_forward.1} parent=1 // pred_check
      _
    $region15: #{pop_linear_forward.1} parent=1 // pred_check_branch
      %38 = sbr.rel (0) target = $region17
    $region16: #{pop_linear_forward.1} parent=1 // pred_region
      %39 = dma.done [#allocation3], 512
    $region17: #{pop_linear_forward.1} parent=1 // pred_fallthru
      _
    // Predicated region
    $region18: #{pop_linear_forward.1} parent=1 // pred_check
      _
    $region19: #{pop_linear_forward.1} parent=1 // pred_check_branch
      %41 = sbr.rel (0) target = $region21
    $region20: #{pop_linear_forward.1} parent=1 // pred_region
      %42 = dma.done [#allocation6], 2048
    $region21: #{pop_linear_forward.1} parent=1 // pred_fallthru
      _
    %v43 = vld [vmem:[#allocation2] sm:$0xff]
    %v44 = vld [vmem:[#allocation2 + $0x8] sm:$0xff]
    %v45 = vld [vmem:[#allocation2 + $0x10] sm:$0xff]
    %v46 = vld [vmem:[#allocation2 + $0x18] sm:$0xff]
    %v47 = vld [vmem:[#allocation5] sm:$0xff]
    %v48 = vld [vmem:[#allocation5 + $0x8] sm:$0xff]
    %v49 = vld [vmem:[#allocation5 + $0x10] sm:$0xff]
    %v50 = vld [vmem:[#allocation5 + $0x18] sm:$0xff]
    %v51 = vld [vmem:[#allocation5 + $0x20] sm:$0xff]
    %v52 = vld [vmem:[#allocation5 + $0x28] sm:$0xff]
    %v53 = vld [vmem:[#allocation5 + $0x30] sm:$0xff]
    %v54 = vld [vmem:[#allocation5 + $0x38] sm:$0xff]
    %v55 = vld [vmem:[#allocation5 + $0x40] sm:$0xff]
    %v56 = vld [vmem:[#allocation5 + $0x48] sm:$0xff]
    %v57 = vld [vmem:[#allocation5 + $0x50] sm:$0xff]
    %v58 = vld [vmem:[#allocation5 + $0x58] sm:$0xff]
    %v59 = vld [vmem:[#allocation5 + $0x60] sm:$0xff]
    %v60 = vld [vmem:[#allocation5 + $0x68] sm:$0xff]
    %v61 = vld [vmem:[#allocation5 + $0x70] sm:$0xff]
    %v62 = vld [vmem:[#allocation5 + $0x78] sm:$0xff]
    %v63 = vld [vmem:[%s2] sm:$0x1]
    %v64 = vld [vmem:[%s2 + $0x1] sm:$0x1]
    %v65 = vld [vmem:[%s2 + $0x2] sm:$0x1]
    %v66 = vld [vmem:[%s2 + $0x3] sm:$0x1]
    %v71 = vlaneseq
    %v72 = vshrl.u32 %v71, 7
    %v73 = vsub.s32 0, %v72
    %v74 = vrot.slane %v63, %v73
    %v75 = vlaneseq
    %v76 = vshrl.u32 %v75, 7
    %v77 = vsub.s32 0, %v76
    %v78 = vrot.slane %v64, %v77
    %v79 = vlaneseq
    %v80 = vshrl.u32 %v79, 7
    %v81 = vsub.s32 0, %v80
    %v82 = vrot.slane %v65, %v81
    %v83 = vlaneseq
    %v84 = vshrl.u32 %v83, 7
    %v85 = vsub.s32 0, %v84
    %v86 = vrot.slane %v66, %v85
    %vm91 = vcmask 261120
    %v93 = vsel %vm91, %v43, 0
    %95 = vmatprep.subr.mxu0 0.0
    %96 = vmatpush1.msra.mxu0 %v47
    %97 = vmatprep.subr.mxu0 0.0
    %98 = vmatpush1.msra.mxu0 %v48
    %99 = vmatprep.subr.mxu0 0.0
    %100 = vmatpush1.msra.mxu0 %v49
    %101 = vmatprep.subr.mxu0 0.0
    %102 = vmatpush1.msra.mxu0 %v50
    %103 = vmatprep.subr.mxu0 0.0
    %104 = vmatpush1.msra.mxu0 0.0
    %105 = vmatprep.subr.mxu0 0.0
    %106 = vmatpush1.msra.mxu0 0.0
    %107 = vmatprep.subr.mxu0 0.0
    %108 = vmatpush1.msra.mxu0 0.0
    %109 = vmatprep.subr.mxu0 0.0
    %110 = vmatpush1.msra.mxu0 0.0
    %111 = vmatprep.subr.mxu0 0.0
    %112 = vmatpush1.msra.mxu0 0.0
    %113 = vmatprep.subr.mxu0 0.0
    %114 = vmatpush1.msra.mxu0 0.0
    %115 = vmatprep.subr.mxu0 0.0
    %116 = vmatpush1.msra.mxu0 0.0
    %117 = vmatprep.subr.mxu0 0.0
    %118 = vmatpush1.msra.mxu0 0.0
    %119 = vmatprep.subr.mxu0 0.0
    %120 = vmatpush1.msra.mxu0 0.0
    %121 = vmatprep.subr.mxu0 0.0
    %122 = vmatpush1.msra.mxu0 0.0
    %123 = vmatprep.subr.mxu0 0.0
    %124 = vmatpush1.msra.mxu0 0.0
    %125 = vmatprep.subr.mxu0 0.0
    %126 = vmatpush1.msra.mxu0 0.0
    %127 = vmatprep.subr.mxu0 0.0
    %128 = vmatpush1.msra.mxu0 0.0
    %129 = vmatprep.subr.mxu0 0.0
    %130 = vmatpush1.msra.mxu0 0.0
    %131 = vmatprep.subr.mxu0 0.0
    %132 = vmatpush1.msra.mxu0 0.0
    %133 = vmatprep.subr.mxu0 0.0
    %134 = vmatpush1.msra.mxu0 0.0
    %135 = vmatprep.subr.mxu0 0.0
    %136 = vmatpush1.msra.mxu0 0.0
    %137 = vmatprep.subr.mxu0 0.0
    %138 = vmatpush1.msra.mxu0 0.0
    %139 = vmatprep.subr.mxu0 0.0
    %140 = vmatpush1.msra.mxu0 0.0
    %141 = vmatprep.subr.mxu0 0.0
    %142 = vmatpush1.msra.mxu0 0.0
    %143 = vmatprep.subr.mxu0 0.0
    %144 = vmatpush1.msra.mxu0 0.0
    %145 = vmatprep.subr.mxu0 0.0
    %146 = vmatpush1.msra.mxu0 0.0
    %147 = vmatprep.subr.mxu0 0.0
    %148 = vmatpush1.msra.mxu0 0.0
    %149 = vmatprep.subr.mxu0 0.0
    %150 = vmatpush1.msra.mxu0 0.0
    %151 = vmatprep.subr.mxu0 0.0
    %152 = vmatpush1.msra.mxu0 0.0
    %153 = vmatprep.subr.mxu0 0.0
    %154 = vmatpush1.msra.mxu0 0.0
    %155 = vmatprep.subr.mxu0 0.0
    %156 = vmatpush1.msra.mxu0 0.0
    %157 = vmatprep.subr.mxu0 0.0
    %158 = vmatpush1.msra.mxu0 0.0
    %159 = vmatprep.mubr.f32.mxu0 0.0
    %160 = vmatmul.mubr.f32.gmra.mrb[0].mxu0 %v93
    %v161 = vpop.f32.mrb[0].mxu0
    %v162 = vadd.f32 %v74, %v161
    %v163 = vpop.f32.mrb[0].mxu0
    %164 = vdwg.mxu0
    %v166 = vsel %vm91, %v44, 0
    %168 = vmatprep.subr.mxu0 0.0
    %169 = vmatpush1.msra.mxu0 %v51
    %170 = vmatprep.subr.mxu0 0.0
    %171 = vmatpush1.msra.mxu0 %v52
    %172 = vmatprep.subr.mxu0 0.0
    %173 = vmatpush1.msra.mxu0 %v53
    %174 = vmatprep.subr.mxu0 0.0
    %175 = vmatpush1.msra.mxu0 %v54
    %176 = vmatprep.subr.mxu0 0.0
    %177 = vmatpush1.msra.mxu0 0.0
    %178 = vmatprep.subr.mxu0 0.0
    %179 = vmatpush1.msra.mxu0 0.0
    %180 = vmatprep.subr.mxu0 0.0
    %181 = vmatpush1.msra.mxu0 0.0
    %182 = vmatprep.subr.mxu0 0.0
    %183 = vmatpush1.msra.mxu0 0.0
    %184 = vmatprep.subr.mxu0 0.0
    %185 = vmatpush1.msra.mxu0 0.0
    %186 = vmatprep.subr.mxu0 0.0
    %187 = vmatpush1.msra.mxu0 0.0
    %188 = vmatprep.subr.mxu0 0.0
    %189 = vmatpush1.msra.mxu0 0.0
    %190 = vmatprep.subr.mxu0 0.0
    %191 = vmatpush1.msra.mxu0 0.0
    %192 = vmatprep.subr.mxu0 0.0
    %193 = vmatpush1.msra.mxu0 0.0
    %194 = vmatprep.subr.mxu0 0.0
    %195 = vmatpush1.msra.mxu0 0.0
    %196 = vmatprep.subr.mxu0 0.0
    %197 = vmatpush1.msra.mxu0 0.0
    %198 = vmatprep.subr.mxu0 0.0
    %199 = vmatpush1.msra.mxu0 0.0
    %200 = vmatprep.subr.mxu0 0.0
    %201 = vmatpush1.msra.mxu0 0.0
    %202 = vmatprep.subr.mxu0 0.0
    %203 = vmatpush1.msra.mxu0 0.0
    %204 = vmatprep.subr.mxu0 0.0
    %205 = vmatpush1.msra.mxu0 0.0
    %206 = vmatprep.subr.mxu0 0.0
    %207 = vmatpush1.msra.mxu0 0.0
    %208 = vmatprep.subr.mxu0 0.0
    %209 = vmatpush1.msra.mxu0 0.0
    %210 = vmatprep.subr.mxu0 0.0
    %211 = vmatpush1.msra.mxu0 0.0
    %212 = vmatprep.subr.mxu0 0.0
    %213 = vmatpush1.msra.mxu0 0.0
    %214 = vmatprep.subr.mxu0 0.0
    %215 = vmatpush1.msra.mxu0 0.0
    %216 = vmatprep.subr.mxu0 0.0
    %217 = vmatpush1.msra.mxu0 0.0
    %218 = vmatprep.subr.mxu0 0.0
    %219 = vmatpush1.msra.mxu0 0.0
    %220 = vmatprep.subr.mxu0 0.0
    %221 = vmatpush1.msra.mxu0 0.0
    %222 = vmatprep.subr.mxu0 0.0
    %223 = vmatpush1.msra.mxu0 0.0
    %224 = vmatprep.subr.mxu0 0.0
    %225 = vmatpush1.msra.mxu0 0.0
    %226 = vmatprep.subr.mxu0 0.0
    %227 = vmatpush1.msra.mxu0 0.0
    %228 = vmatprep.subr.mxu0 0.0
    %229 = vmatpush1.msra.mxu0 0.0
    %230 = vmatprep.subr.mxu0 0.0
    %231 = vmatpush1.msra.mxu0 0.0
    %232 = vmatprep.mubr.f32.mxu0 0.0
    %233 = vmatmul.mubr.f32.gmra.mrb[0].mxu0 %v166
    %v234 = vpop.f32.mrb[0].mxu0
    %v235 = vadd.f32 %v78, %v234
    %v236 = vpop.f32.mrb[0].mxu0
    %237 = vdwg.mxu0
    %v239 = vsel %vm91, %v45, 0
    %241 = vmatprep.subr.mxu0 0.0
    %242 = vmatpush1.msra.mxu0 %v55
    %243 = vmatprep.subr.mxu0 0.0
    %244 = vmatpush1.msra.mxu0 %v56
    %245 = vmatprep.subr.mxu0 0.0
    %246 = vmatpush1.msra.mxu0 %v57
    %247 = vmatprep.subr.mxu0 0.0
    %248 = vmatpush1.msra.mxu0 %v58
    %249 = vmatprep.subr.mxu0 0.0
    %250 = vmatpush1.msra.mxu0 0.0
    %251 = vmatprep.subr.mxu0 0.0
    %252 = vmatpush1.msra.mxu0 0.0
    %253 = vmatprep.subr.mxu0 0.0
    %254 = vmatpush1.msra.mxu0 0.0
    %255 = vmatprep.subr.mxu0 0.0
    %256 = vmatpush1.msra.mxu0 0.0
    %257 = vmatprep.subr.mxu0 0.0
    %258 = vmatpush1.msra.mxu0 0.0
    %259 = vmatprep.subr.mxu0 0.0
    %260 = vmatpush1.msra.mxu0 0.0
    %261 = vmatprep.subr.mxu0 0.0
    %262 = vmatpush1.msra.mxu0 0.0
    %263 = vmatprep.subr.mxu0 0.0
    %264 = vmatpush1.msra.mxu0 0.0
    %265 = vmatprep.subr.mxu0 0.0
    %266 = vmatpush1.msra.mxu0 0.0
    %267 = vmatprep.subr.mxu0 0.0
    %268 = vmatpush1.msra.mxu0 0.0
    %269 = vmatprep.subr.mxu0 0.0
    %270 = vmatpush1.msra.mxu0 0.0
    %271 = vmatprep.subr.mxu0 0.0
    %272 = vmatpush1.msra.mxu0 0.0
    %273 = vmatprep.subr.mxu0 0.0
    %274 = vmatpush1.msra.mxu0 0.0
    %275 = vmatprep.subr.mxu0 0.0
    %276 = vmatpush1.msra.mxu0 0.0
    %277 = vmatprep.subr.mxu0 0.0
    %278 = vmatpush1.msra.mxu0 0.0
    %279 = vmatprep.subr.mxu0 0.0
    %280 = vmatpush1.msra.mxu0 0.0
    %281 = vmatprep.subr.mxu0 0.0
    %282 = vmatpush1.msra.mxu0 0.0
    %283 = vmatprep.subr.mxu0 0.0
    %284 = vmatpush1.msra.mxu0 0.0
    %285 = vmatprep.subr.mxu0 0.0
    %286 = vmatpush1.msra.mxu0 0.0
    %287 = vmatprep.subr.mxu0 0.0
    %288 = vmatpush1.msra.mxu0 0.0
    %289 = vmatprep.subr.mxu0 0.0
    %290 = vmatpush1.msra.mxu0 0.0
    %291 = vmatprep.subr.mxu0 0.0
    %292 = vmatpush1.msra.mxu0 0.0
    %293 = vmatprep.subr.mxu0 0.0
    %294 = vmatpush1.msra.mxu0 0.0
    %295 = vmatprep.subr.mxu0 0.0
    %296 = vmatpush1.msra.mxu0 0.0
    %297 = vmatprep.subr.mxu0 0.0
    %298 = vmatpush1.msra.mxu0 0.0
    %299 = vmatprep.subr.mxu0 0.0
    %300 = vmatpush1.msra.mxu0 0.0
    %301 = vmatprep.subr.mxu0 0.0
    %302 = vmatpush1.msra.mxu0 0.0
    %303 = vmatprep.subr.mxu0 0.0
    %304 = vmatpush1.msra.mxu0 0.0
    %305 = vmatprep.mubr.f32.mxu0 0.0
    %306 = vmatmul.mubr.f32.gmra.mrb[0].mxu0 %v239
    %v307 = vpop.f32.mrb[0].mxu0
    %v308 = vadd.f32 %v82, %v307
    %v309 = vpop.f32.mrb[0].mxu0
    %310 = vdwg.mxu0
    %v312 = vsel %vm91, %v46, 0
    %314 = vmatprep.subr.mxu0 0.0
    %315 = vmatpush1.msra.mxu0 %v59
    %316 = vmatprep.subr.mxu0 0.0
    %317 = vmatpush1.msra.mxu0 %v60
    %318 = vmatprep.subr.mxu0 0.0
    %319 = vmatpush1.msra.mxu0 %v61
    %320 = vmatprep.subr.mxu0 0.0
    %321 = vmatpush1.msra.mxu0 %v62
    %322 = vmatprep.subr.mxu0 0.0
    %323 = vmatpush1.msra.mxu0 0.0
    %324 = vmatprep.subr.mxu0 0.0
    %325 = vmatpush1.msra.mxu0 0.0
    %326 = vmatprep.subr.mxu0 0.0
    %327 = vmatpush1.msra.mxu0 0.0
    %328 = vmatprep.subr.mxu0 0.0
    %329 = vmatpush1.msra.mxu0 0.0
    %330 = vmatprep.subr.mxu0 0.0
    %331 = vmatpush1.msra.mxu0 0.0
    %332 = vmatprep.subr.mxu0 0.0
    %333 = vmatpush1.msra.mxu0 0.0
    %334 = vmatprep.subr.mxu0 0.0
    %335 = vmatpush1.msra.mxu0 0.0
    %336 = vmatprep.subr.mxu0 0.0
    %337 = vmatpush1.msra.mxu0 0.0
    %338 = vmatprep.subr.mxu0 0.0
    %339 = vmatpush1.msra.mxu0 0.0
    %340 = vmatprep.subr.mxu0 0.0
    %341 = vmatpush1.msra.mxu0 0.0
    %342 = vmatprep.subr.mxu0 0.0
    %343 = vmatpush1.msra.mxu0 0.0
    %344 = vmatprep.subr.mxu0 0.0
    %345 = vmatpush1.msra.mxu0 0.0
    %346 = vmatprep.subr.mxu0 0.0
    %347 = vmatpush1.msra.mxu0 0.0
    %348 = vmatprep.subr.mxu0 0.0
    %349 = vmatpush1.msra.mxu0 0.0
    %350 = vmatprep.subr.mxu0 0.0
    %351 = vmatpush1.msra.mxu0 0.0
    %352 = vmatprep.subr.mxu0 0.0
    %353 = vmatpush1.msra.mxu0 0.0
    %354 = vmatprep.subr.mxu0 0.0
    %355 = vmatpush1.msra.mxu0 0.0
    %356 = vmatprep.subr.mxu0 0.0
    %357 = vmatpush1.msra.mxu0 0.0
    %358 = vmatprep.subr.mxu0 0.0
    %359 = vmatpush1.msra.mxu0 0.0
    %360 = vmatprep.subr.mxu0 0.0
    %361 = vmatpush1.msra.mxu0 0.0
    %362 = vmatprep.subr.mxu0 0.0
    %363 = vmatpush1.msra.mxu0 0.0
    %364 = vmatprep.subr.mxu0 0.0
    %365 = vmatpush1.msra.mxu0 0.0
    %366 = vmatprep.subr.mxu0 0.0
    %367 = vmatpush1.msra.mxu0 0.0
    %368 = vmatprep.subr.mxu0 0.0
    %369 = vmatpush1.msra.mxu0 0.0
    %370 = vmatprep.subr.mxu0 0.0
    %371 = vmatpush1.msra.mxu0 0.0
    %372 = vmatprep.subr.mxu0 0.0
    %373 = vmatpush1.msra.mxu0 0.0
    %374 = vmatprep.subr.mxu0 0.0
    %375 = vmatpush1.msra.mxu0 0.0
    %376 = vmatprep.subr.mxu0 0.0
    %377 = vmatpush1.msra.mxu0 0.0
    %378 = vmatprep.mubr.f32.mxu0 0.0
    %379 = vmatmul.mubr.f32.gmra.mrb[0].mxu0 %v312
    %v380 = vpop.f32.mrb[0].mxu0
    %v381 = vadd.f32 %v86, %v380
    %v382 = vpop.f32.mrb[0].mxu0
    %383 = vdwg.mxu0
    %384 = vst [vmem:[#allocation7] sm:$0xff] %v162
    %385 = vst [vmem:[#allocation7 + $0x8] sm:$0xff] %v235
    %386 = vst [vmem:[#allocation7 + $0x10] sm:$0xff] %v308
    %387 = vst [vmem:[#allocation7 + $0x18] sm:$0xff] %v381
    // Predicated region
    $region22: #{pop_linear_forward.1} parent=1 // pred_check
      _
    $region23: #{pop_linear_forward.1} parent=1 // pred_check_branch
      %389 = sbr.rel (0) target = $region25
    $region24: #{pop_linear_forward.1} parent=1 // pred_region
      %s391 = ssub.s32 512, 512
      %392 = vsyncadd [#allocation4], %s391
      %s393 = sshll.u32 [#allocation7], 4
      %s394 = int_to_ptr.vmem [resolvable:$true] %s393
      %399 = dma.vmem_to_hbm [thread:$0]  %s394, 512, %s3, [#allocation4], 128, 128, 8
    $region25: #{pop_linear_forward.1} parent=1 // pred_fallthru
      _
    // Predicated region
    $region26: #{pop_linear_forward.1} parent=1 // pred_check
      _
    $region27: #{pop_linear_forward.1} parent=1 // pred_check_branch
      %401 = sbr.rel (0) target = $region29
    $region28: #{pop_linear_forward.1} parent=1 // pred_region
      %402 = dma.done [#allocation4], 512
    $region29: #{pop_linear_forward.1} parent=1 // pred_fallthru
      _
    %403 = vsyncpa [#allocation3], 1
    %404 = vsyncpa [#allocation6], 1
    %405 = vsyncpa [#allocation4], 1

</llo_original>
